<compile_context>
chip_gen: v7x
topology: tpu7x:2x2x1
jax: 0.10.0
libtpu: 0.0.40
codegen_flags: <defaults>
</compile_context>

<pallas_src>
import functools

import jax
import jax.numpy as jnp
from jax.experimental import pallas as pl
from jax.experimental.pallas import tpu as pltpu

HIDDEN = 32            # config.hidden_size
SYMBOLIC_LAYERS = 3    # config.symbolic_layers
_ROW_TILE = 1024       # max packed rows per grid step
_SQRT_2_OVER_PI = 0.7978845608028654


def _gelu_tanh(x):
  # tanh-approximate GELU (routes the transcendental to the EUP).
  return 0.5 * x * (1.0 + jnp.tanh(_SQRT_2_OVER_PI * (x + 0.044715 * x * x * x)))


# --------------------------------------------------------------------------
# Kernel
# --------------------------------------------------------------------------
def _symexec_kernel(x_ref, w_ref, b_ref, o_ref, *, num_hidden_layers):
  """One row-tile of packed activations through the whole MLP stack.

  x_ref: (TILE, LANES)  bf16   packed activations (PACK rows per LANES lanes)
  w_ref: (L+1, LANES, LANES) bf16   block-diagonal, pre-transposed weights
  b_ref: (L+1, 1, LANES) f32   lane-tiled biases
  o_ref: (TILE, LANES)  bf16   packed outputs
  """
  x = x_ref[...]                                  # bf16
  for l in range(num_hidden_layers):
    h = jnp.dot(x, w_ref[l], preferred_element_type=jnp.float32) + b_ref[l]
    x = _gelu_tanh(h).astype(x_ref.dtype)         # back to bf16 for the MXU
  out = (jnp.dot(x, w_ref[num_hidden_layers],
                 preferred_element_type=jnp.float32)
         + b_ref[num_hidden_layers])
  o_ref[...] = out.astype(o_ref.dtype)


# --------------------------------------------------------------------------
# One-time parameter preparation (hoisted out of the forward pass)
# --------------------------------------------------------------------------
def _preferred_lanes():
  """Lane width for activation packing: 256 on 256x256-MXU chips (v6e/v7x),
  128 on 128x128-MXU chips (v5e and older)."""
  try:
    kind = jax.devices()[0].device_kind.lower()
  except Exception:
    return 128
  if any(g in kind for g in ("v2", "v3", "v4", "v5")):
    return 128
  return 256


def pack_symbolic_params(params, *, lanes=None):
  """Pack all layer weights into two stacked buffers, done ONCE per model.

  Returns:
    w_packed: (L+1, lanes, lanes) bf16  block-diagonal, (in, out) order
    b_packed: (L+1, 1, lanes)     f32   lane-tiled biases
  """
  exec_w = jnp.asarray(params['exec_w'], jnp.float32)   # (L, H, H) torch layout
  exec_b = jnp.asarray(params['exec_b'], jnp.float32)   # (L, H)
  out_w = jnp.asarray(params['out_w'], jnp.float32)     # (H, H)
  out_b = jnp.asarray(params['out_b'], jnp.float32)     # (H,)
  H = exec_w.shape[-1]

  if lanes is None:
    lanes = _preferred_lanes()
  if H >= lanes or lanes % H != 0:
    # pack=1 fallback; correct but sub-128-lane stores if H % 128 != 0.
    # TODO(synk): pad H up to a multiple of 128 for the non-dividing case.
    lanes = H
  pack = lanes // H

  w_all = jnp.concatenate([exec_w, out_w[None]], axis=0)   # (L+1, H, H)
  b_all = jnp.concatenate([exec_b, out_b[None]], axis=0)   # (L+1, H)
  wt = jnp.swapaxes(w_all, -1, -2)                         # (in, out) order
  eye = jnp.eye(pack, dtype=wt.dtype)
  w_packed = jax.vmap(lambda w: jnp.kron(eye, w))(wt)      # (L+1, lanes, lanes)
  b_packed = jnp.tile(b_all, (1, pack))[:, None, :]        # (L+1, 1, lanes)
  return w_packed.astype(jnp.bfloat16), b_packed.astype(jnp.float32)


# --------------------------------------------------------------------------
# Forward wrapper
# --------------------------------------------------------------------------
def symbolic_executor_forward(symbolic_repr, w_packed, b_packed, *,
                              row_tile=_ROW_TILE):
  """Pallas forward for DifferentiableSymbolicExecutor.

  symbolic_repr: (..., H) array (e.g. (B, S, H)).
  w_packed / b_packed: outputs of pack_symbolic_params.
  """
  orig_shape = symbolic_repr.shape
  orig_dtype = symbolic_repr.dtype
  H = orig_shape[-1]
  lanes = w_packed.shape[-1]
  num_mats = w_packed.shape[0]
  assert lanes % H == 0
  pack = lanes // H

  x2 = symbolic_repr.reshape(-1, H).astype(jnp.bfloat16)   # bf16 over the boundary
  n = x2.shape[0]
  n_pack = -(-n // pack)                                   # packed rows (ceil)

  # --- choose the row tile -------------------------------------------------
  if n_pack <= 16:
    tile_rows = n_pack                 # tiny: one full-extent block, no padding
  else:
    # at least 2 grid steps so v7x's second TensorCore gets work,
    # capped at row_tile packed rows per step.
    half = -(-n_pack // 2)
    tile_rows = min(row_tile, -(-half // 8) * 8)
  n_pack_pad = -(-n_pack // tile_rows) * tile_rows
  n_pad_rows = n_pack_pad * pack

  if n_pad_rows != n:                  # pad only when shapes don't line up
    x2 = jnp.pad(x2, ((0, n_pad_rows - n), (0, 0)))
  x_packed = x2.reshape(n_pack_pad, lanes)                 # lane-dense view

  grid = (n_pack_pad // tile_rows,)

  out_packed = pl.pallas_call(
      functools.partial(_symexec_kernel, num_hidden_layers=num_mats - 1),
      out_shape=jax.ShapeDtypeStruct((n_pack_pad, lanes), jnp.bfloat16),
      grid_spec=pltpu.PrefetchScalarGridSpec(
          num_scalar_prefetch=0,
          grid=grid,
          in_specs=[
              pl.BlockSpec((tile_rows, lanes), lambda i: (i, 0)),
              pl.BlockSpec((num_mats, lanes, lanes), lambda i: (0, 0, 0)),
              pl.BlockSpec((num_mats, 1, lanes), lambda i: (0, 0, 0)),
          ],
          out_specs=pl.BlockSpec((tile_rows, lanes), lambda i: (i, 0))),
      compiler_params=pltpu.CompilerParams(
          dimension_semantics=("parallel",)),
  )(x_packed, w_packed, b_packed)

  out = out_packed.reshape(n_pad_rows, H)
  if n_pad_rows != n:
    out = out[:n]
  return out.reshape(orig_shape).astype(orig_dtype)


# --------------------------------------------------------------------------
# Reference & params
# --------------------------------------------------------------------------
def _reference(x, params):
  """Pure-JAX reference (same math as the PyTorch forward: exact GELU, f32)."""
  h = x.astype(jnp.float32)
  for l in range(params['exec_w'].shape[0]):
    z = jnp.dot(h, params['exec_w'][l].T,
                precision=jax.lax.Precision.HIGHEST) + params['exec_b'][l]
    h = 0.5 * z * (1.0 + jax.lax.erf(z * 0.7071067811865476))
  return jnp.dot(h, params['out_w'].T,
                 precision=jax.lax.Precision.HIGHEST) + params['out_b']


def init_params(key, hidden=HIDDEN, num_layers=SYMBOLIC_LAYERS):
  ks = jax.random.split(key, 4)

  def nrm(k, shape, scale=0.05):
    return (scale * jax.random.normal(k, shape)).astype(jnp.float32)

  return dict(
      exec_w=nrm(ks[0], (num_layers, hidden, hidden)),   # execution_layers[l].weight
      exec_b=nrm(ks[1], (num_layers, hidden), 0.01),     # execution_layers[l].bias
      out_w=nrm(ks[2], (hidden, hidden)),                # output_proj.weight
      out_b=nrm(ks[3], (hidden,), 0.01),                 # output_proj.bias
  )


if __name__ == "__main__":
  B, S, H = 2, 8, HIDDEN
  key = jax.random.PRNGKey(0)
  kx, kp = jax.random.split(key)
  symbolic_repr = jax.random.normal(kx, (B, S, H), jnp.float32)
  params = init_params(kp)

  # one-time parameter prep (hoisted out of the forward path)
  w_packed, b_packed = pack_symbolic_params(params)
  fwd = jax.jit(symbolic_executor_forward)

  out = fwd(symbolic_repr, w_packed, b_packed)
  out = jax.block_until_ready(out)

  assert out.shape == (B, S, H)
  assert out.dtype == symbolic_repr.dtype
  ref = _reference(symbolic_repr, params)
  out_f32 = out.astype(jnp.float32)
  max_err = float(jnp.max(jnp.abs(out_f32 - ref)))
  assert jnp.allclose(out_f32, ref, atol=5e-3, rtol=5e-3), max_err
  print("KERNEL_OK")
</pallas_src>

<mosaic_0001>
module attributes {stable_mosaic.version = 11 : i64} {
  func.func @_symexec_kernel(%arg0: i32, %arg1: memref<2x256xbf16, #tpu.memory_space<vmem>>, %arg2: memref<4x256x256xbf16, #tpu.memory_space<vmem>>, %arg3: memref<4x1x256xf32, #tpu.memory_space<vmem>>, %arg4: memref<2x256xbf16, #tpu.memory_space<vmem>>) attributes {dimension_semantics = [#tpu.dimension_semantics<parallel>], iteration_bounds = array<i64: 1>, scalar_prefetch = 0 : i64, scratch_operands = 0 : i64, tpu.core_type = #tpu.core_type<tc>, window_params = [{transform_indices = @transform_0, window_bounds = array<i64: 2, 256>}, {pipeline_mode = #tpu.pipeline_mode<synchronous>, transform_indices = @transform_1, window_bounds = array<i64: 4, 256, 256>}, {pipeline_mode = #tpu.pipeline_mode<synchronous>, transform_indices = @transform_2, window_bounds = array<i64: 4, 1, 256>}, {transform_indices = @transform_3, window_bounds = array<i64: 2, 256>}]} {
    %c0 = arith.constant 0 : index
    %c0_0 = arith.constant 0 : index
    %0 = vector.load %arg1[%c0, %c0_0] : memref<2x256xbf16, #tpu.memory_space<vmem>>, vector<2x256xbf16>
    %c0_1 = arith.constant 0 : index
    %c0_2 = arith.constant 0 : index
    %c0_3 = arith.constant 0 : index
    %1 = vector.load %arg2[%c0_1, %c0_2, %c0_3] : memref<4x256x256xbf16, #tpu.memory_space<vmem>>, vector<1x256x256xbf16>
    %2 = vector.shape_cast %1 : vector<1x256x256xbf16> to vector<256x256xbf16>
    %cst = arith.constant dense<0.000000e+00> : vector<2x256xf32>
    %3 = tpu.matmul %0, %2, %cst {dimension_numbers = #tpu.dot_dimension_numbers<[1], [0], [0], [1], [0, 0, 1, 1], [], []>} : vector<2x256xbf16>, vector<256x256xbf16>, vector<2x256xf32> -> vector<2x256xf32>
    %c0_4 = arith.constant 0 : index
    %c0_5 = arith.constant 0 : index
    %c0_6 = arith.constant 0 : index
    %4 = vector.load %arg3[%c0_4, %c0_5, %c0_6] : memref<4x1x256xf32, #tpu.memory_space<vmem>>, vector<1x1x256xf32>
    %5 = vector.shape_cast %4 : vector<1x1x256xf32> to vector<1x256xf32>
    %6 = vector.broadcast %5 : vector<1x256xf32> to vector<2x256xf32>
    %7 = arith.addf %3, %6 : vector<2x256xf32>
    %cst_7 = arith.constant 5.000000e-01 : f32
    %8 = vector.broadcast %cst_7 : f32 to vector<2x256xf32>
    %9 = arith.mulf %8, %7 : vector<2x256xf32>
    %cst_8 = arith.constant 4.471500e-02 : f32
    %10 = vector.broadcast %cst_8 : f32 to vector<2x256xf32>
    %11 = arith.mulf %10, %7 : vector<2x256xf32>
    %12 = arith.mulf %11, %7 : vector<2x256xf32>
    %13 = arith.mulf %12, %7 : vector<2x256xf32>
    %14 = arith.addf %7, %13 : vector<2x256xf32>
    %cst_9 = arith.constant 0.797884583 : f32
    %15 = vector.broadcast %cst_9 : f32 to vector<2x256xf32>
    %16 = arith.mulf %15, %14 : vector<2x256xf32>
    %17 = math.tanh %16 : vector<2x256xf32>
    %cst_10 = arith.constant 1.000000e+00 : f32
    %18 = vector.broadcast %cst_10 : f32 to vector<2x256xf32>
    %19 = arith.addf %18, %17 : vector<2x256xf32>
    %20 = arith.mulf %9, %19 : vector<2x256xf32>
    %21 = arith.truncf %20 : vector<2x256xf32> to vector<2x256xbf16>
    %c1 = arith.constant 1 : index
    %c0_11 = arith.constant 0 : index
    %c0_12 = arith.constant 0 : index
    %22 = vector.load %arg2[%c1, %c0_11, %c0_12] : memref<4x256x256xbf16, #tpu.memory_space<vmem>>, vector<1x256x256xbf16>
    %23 = vector.shape_cast %22 : vector<1x256x256xbf16> to vector<256x256xbf16>
    %cst_13 = arith.constant dense<0.000000e+00> : vector<2x256xf32>
    %24 = tpu.matmul %21, %23, %cst_13 {dimension_numbers = #tpu.dot_dimension_numbers<[1], [0], [0], [1], [0, 0, 1, 1], [], []>} : vector<2x256xbf16>, vector<256x256xbf16>, vector<2x256xf32> -> vector<2x256xf32>
    %c1_14 = arith.constant 1 : index
    %c0_15 = arith.constant 0 : index
    %c0_16 = arith.constant 0 : index
    %25 = vector.load %arg3[%c1_14, %c0_15, %c0_16] : memref<4x1x256xf32, #tpu.memory_space<vmem>>, vector<1x1x256xf32>
    %26 = vector.shape_cast %25 : vector<1x1x256xf32> to vector<1x256xf32>
    %27 = vector.broadcast %26 : vector<1x256xf32> to vector<2x256xf32>
    %28 = arith.addf %24, %27 : vector<2x256xf32>
    %cst_17 = arith.constant 5.000000e-01 : f32
    %29 = vector.broadcast %cst_17 : f32 to vector<2x256xf32>
    %30 = arith.mulf %29, %28 : vector<2x256xf32>
    %cst_18 = arith.constant 4.471500e-02 : f32
    %31 = vector.broadcast %cst_18 : f32 to vector<2x256xf32>
    %32 = arith.mulf %31, %28 : vector<2x256xf32>
    %33 = arith.mulf %32, %28 : vector<2x256xf32>
    %34 = arith.mulf %33, %28 : vector<2x256xf32>
    %35 = arith.addf %28, %34 : vector<2x256xf32>
    %cst_19 = arith.constant 0.797884583 : f32
    %36 = vector.broadcast %cst_19 : f32 to vector<2x256xf32>
    %37 = arith.mulf %36, %35 : vector<2x256xf32>
    %38 = math.tanh %37 : vector<2x256xf32>
    %cst_20 = arith.constant 1.000000e+00 : f32
    %39 = vector.broadcast %cst_20 : f32 to vector<2x256xf32>
    %40 = arith.addf %39, %38 : vector<2x256xf32>
    %41 = arith.mulf %30, %40 : vector<2x256xf32>
    %42 = arith.truncf %41 : vector<2x256xf32> to vector<2x256xbf16>
    %c2 = arith.constant 2 : index
    %c0_21 = arith.constant 0 : index
    %c0_22 = arith.constant 0 : index
    %43 = vector.load %arg2[%c2, %c0_21, %c0_22] : memref<4x256x256xbf16, #tpu.memory_space<vmem>>, vector<1x256x256xbf16>
    %44 = vector.shape_cast %43 : vector<1x256x256xbf16> to vector<256x256xbf16>
    %cst_23 = arith.constant dense<0.000000e+00> : vector<2x256xf32>
    %45 = tpu.matmul %42, %44, %cst_23 {dimension_numbers = #tpu.dot_dimension_numbers<[1], [0], [0], [1], [0, 0, 1, 1], [], []>} : vector<2x256xbf16>, vector<256x256xbf16>, vector<2x256xf32> -> vector<2x256xf32>
    %c2_24 = arith.constant 2 : index
    %c0_25 = arith.constant 0 : index
    %c0_26 = arith.constant 0 : index
    %46 = vector.load %arg3[%c2_24, %c0_25, %c0_26] : memref<4x1x256xf32, #tpu.memory_space<vmem>>, vector<1x1x256xf32>
    %47 = vector.shape_cast %46 : vector<1x1x256xf32> to vector<1x256xf32>
    %48 = vector.broadcast %47 : vector<1x256xf32> to vector<2x256xf32>
    %49 = arith.addf %45, %48 : vector<2x256xf32>
    %cst_27 = arith.constant 5.000000e-01 : f32
    %50 = vector.broadcast %cst_27 : f32 to vector<2x256xf32>
    %51 = arith.mulf %50, %49 : vector<2x256xf32>
    %cst_28 = arith.constant 4.471500e-02 : f32
    %52 = vector.broadcast %cst_28 : f32 to vector<2x256xf32>
    %53 = arith.mulf %52, %49 : vector<2x256xf32>
    %54 = arith.mulf %53, %49 : vector<2x256xf32>
    %55 = arith.mulf %54, %49 : vector<2x256xf32>
    %56 = arith.addf %49, %55 : vector<2x256xf32>
    %cst_29 = arith.constant 0.797884583 : f32
    %57 = vector.broadcast %cst_29 : f32 to vector<2x256xf32>
    %58 = arith.mulf %57, %56 : vector<2x256xf32>
    %59 = math.tanh %58 : vector<2x256xf32>
    %cst_30 = arith.constant 1.000000e+00 : f32
    %60 = vector.broadcast %cst_30 : f32 to vector<2x256xf32>
    %61 = arith.addf %60, %59 : vector<2x256xf32>
    %62 = arith.mulf %51, %61 : vector<2x256xf32>
    %63 = arith.truncf %62 : vector<2x256xf32> to vector<2x256xbf16>
    %c3 = arith.constant 3 : index
    %c0_31 = arith.constant 0 : index
    %c0_32 = arith.constant 0 : index
    %64 = vector.load %arg2[%c3, %c0_31, %c0_32] : memref<4x256x256xbf16, #tpu.memory_space<vmem>>, vector<1x256x256xbf16>
    %65 = vector.shape_cast %64 : vector<1x256x256xbf16> to vector<256x256xbf16>
    %cst_33 = arith.constant dense<0.000000e+00> : vector<2x256xf32>
    %66 = tpu.matmul %63, %65, %cst_33 {dimension_numbers = #tpu.dot_dimension_numbers<[1], [0], [0], [1], [0, 0, 1, 1], [], []>} : vector<2x256xbf16>, vector<256x256xbf16>, vector<2x256xf32> -> vector<2x256xf32>
    %c3_34 = arith.constant 3 : index
    %c0_35 = arith.constant 0 : index
    %c0_36 = arith.constant 0 : index
    %67 = vector.load %arg3[%c3_34, %c0_35, %c0_36] : memref<4x1x256xf32, #tpu.memory_space<vmem>>, vector<1x1x256xf32>
    %68 = vector.shape_cast %67 : vector<1x1x256xf32> to vector<1x256xf32>
    %69 = vector.broadcast %68 : vector<1x256xf32> to vector<2x256xf32>
    %70 = arith.addf %66, %69 : vector<2x256xf32>
    %71 = arith.truncf %70 : vector<2x256xf32> to vector<2x256xbf16>
    %c0_37 = arith.constant 0 : index
    %c0_38 = arith.constant 0 : index
    %72 = vector.load %arg4[%c0_37, %c0_38] : memref<2x256xbf16, #tpu.memory_space<vmem>>, vector<2x256xbf16>
    tpu.vector_store %arg4[%c0_37, %c0_38], %71 {strides = array<i32>} : memref<2x256xbf16, #tpu.memory_space<vmem>>, vector<2x256xbf16>,
    return
  }
  func.func @transform_0(%arg0: i32) -> (i32, i32) {
    %c0_i32 = arith.constant 0 : i32
    %c0_i32_0 = arith.constant 0 : i32
    return %arg0, %c0_i32 : i32, i32
  }
  func.func @transform_1(%arg0: i32) -> (i32, i32, i32) {
    %c0_i32 = arith.constant 0 : i32
    %c0_i32_0 = arith.constant 0 : i32
    %c0_i32_1 = arith.constant 0 : i32
    %c0_i32_2 = arith.constant 0 : i32
    return %c0_i32, %c0_i32_0, %c0_i32_1 : i32, i32, i32
  }
  func.func @transform_2(%arg0: i32) -> (i32, i32, i32) {
    %c0_i32 = arith.constant 0 : i32
    %c0_i32_0 = arith.constant 0 : i32
    %c0_i32_1 = arith.constant 0 : i32
    %c0_i32_2 = arith.constant 0 : i32
    return %c0_i32, %c0_i32_0, %c0_i32_1 : i32, i32, i32
  }
  func.func @transform_3(%arg0: i32) -> (i32, i32) {
    %c0_i32 = arith.constant 0 : i32
    %c0_i32_0 = arith.constant 0 : i32
    return %arg0, %c0_i32 : i32, i32
  }
}

</mosaic_0001>

<llo_original>
// kernel: symbolic_executor_forward.1
$region0: #{symbolic_executor_forward.1}
  #allocation0 [shape = 'u32[]', space=smem, size = 0x4, offset = 0x4, fixed_abs, tag = 'smem constant byte address 0x4 - core index']
  #allocation1 [shape = 'u32[144,128]{1,0:T(1,128)}', space=vmem, size = 0x12000, scoped, tag = 'internal scratch']
  %s0 = inlined_call_operand.vmem [shape: bf16[2,256], index: 0, kind: input, shape index: {}]
  %s1 = inlined_call_operand.hbm [shape: bf16[4,256,256], index: 1, kind: input, shape index: {}]
  %s2 = inlined_call_operand.vmem [shape: f32[4,1,256], index: 2, kind: input, shape index: {}]
  %s3 = inlined_call_operand.vmem [shape: bf16[2,256], index: 3, kind: output, shape index: {}]
  %s4 = sld [smem:[#allocation0]]
  $region26: #{symbolic_executor_forward.1} parent=0
    _
  %s6 = ssub.s32 1, %s4
  %s7 = scalar_select 0, %s6, %s4
  $region1: #{symbolic_executor_forward.1} parent=0
    #allocation2 [shape = 'u8[524288]{0}', space=vmem, size = 0x80000, scoped, tag = 'input window, operand 1, single buffered']
    #allocation3 [shape = 's32[1]{0}', space=sflag, size = 0x4, scoped, tag = 'scoped memory for symbolic_executor_forward.1']
    %8 = vsyncpa [#allocation3], 0
    // Predicated region
    $region2: #{symbolic_executor_forward.1} parent=1 // pred_check
      _
    $region3: #{symbolic_executor_forward.1} parent=1 // pred_check_branch
      %10 = sbr.rel (0) target = $region5
    $region4: #{symbolic_executor_forward.1} parent=1 // pred_region
      _
    $region5: #{symbolic_executor_forward.1} parent=1 // pred_fallthru
      _
    // Predicated region
    $region6: #{symbolic_executor_forward.1} parent=1 // pred_check
      _
    $region7: #{symbolic_executor_forward.1} parent=1 // pred_check_branch
      %12 = sbr.rel (0) target = $region9
    $region8: #{symbolic_executor_forward.1} parent=1 // pred_region
      %s14 = ssub.s32 16384, 16384
      %15 = vsyncadd [#allocation3], %s14
      %s16 = sshll.u32 [#allocation2], 4
      %s17 = int_to_ptr.vmem [resolvable:$true] %s16
      %22 = dma.hbm_to_vmem [thread:$0]  %s1, 16384, %s17, [#allocation3], 128, 128, 8
    $region9: #{symbolic_executor_forward.1} parent=1 // pred_fallthru
      _
    // Predicated region
    $region10: #{symbolic_executor_forward.1} parent=1 // pred_check
      _
    $region11: #{symbolic_executor_forward.1} parent=1 // pred_check_branch
      %24 = sbr.rel (0) target = $region13
    $region12: #{symbolic_executor_forward.1} parent=1 // pred_region
      _
    $region13: #{symbolic_executor_forward.1} parent=1 // pred_fallthru
      _
    // Predicated region
    $region14: #{symbolic_executor_forward.1} parent=1 // pred_check
      _
    $region15: #{symbolic_executor_forward.1} parent=1 // pred_check_branch
      %26 = sbr.rel (0) target = $region17
    $region16: #{symbolic_executor_forward.1} parent=1 // pred_region
      %27 = dma.done [#allocation3], 16384
    $region17: #{symbolic_executor_forward.1} parent=1 // pred_fallthru
      _
    %v28 = vld [vmem:[%s0] sm:$0x3]
    %v29 = vld [vmem:[#allocation2] sm:$0xff]
    %v30 = vld [vmem:[#allocation2 + $0x8] sm:$0xff]
    %v31 = vld [vmem:[#allocation2 + $0x10] sm:$0xff]
    %v32 = vld [vmem:[#allocation2 + $0x18] sm:$0xff]
    %v33 = vld [vmem:[#allocation2 + $0x20] sm:$0xff]
    %v34 = vld [vmem:[#allocation2 + $0x28] sm:$0xff]
    %v35 = vld [vmem:[#allocation2 + $0x30] sm:$0xff]
    %v36 = vld [vmem:[#allocation2 + $0x38] sm:$0xff]
    %v37 = vld [vmem:[#allocation2 + $0x40] sm:$0xff]
    %v38 = vld [vmem:[#allocation2 + $0x48] sm:$0xff]
    %v39 = vld [vmem:[#allocation2 + $0x50] sm:$0xff]
    %v40 = vld [vmem:[#allocation2 + $0x58] sm:$0xff]
    %v41 = vld [vmem:[#allocation2 + $0x60] sm:$0xff]
    %v42 = vld [vmem:[#allocation2 + $0x68] sm:$0xff]
    %v43 = vld [vmem:[#allocation2 + $0x70] sm:$0xff]
    %v44 = vld [vmem:[#allocation2 + $0x78] sm:$0xff]
    %v45 = vld [vmem:[#allocation2 + $0x80] sm:$0xff]
    %v46 = vld [vmem:[#allocation2 + $0x88] sm:$0xff]
    %v47 = vld [vmem:[#allocation2 + $0x90] sm:$0xff]
    %v48 = vld [vmem:[#allocation2 + $0x98] sm:$0xff]
    %v49 = vld [vmem:[#allocation2 + $0xa0] sm:$0xff]
    %v50 = vld [vmem:[#allocation2 + $0xa8] sm:$0xff]
    %v51 = vld [vmem:[#allocation2 + $0xb0] sm:$0xff]
    %v52 = vld [vmem:[#allocation2 + $0xb8] sm:$0xff]
    %v53 = vld [vmem:[#allocation2 + $0xc0] sm:$0xff]
    %v54 = vld [vmem:[#allocation2 + $0xc8] sm:$0xff]
    %v55 = vld [vmem:[#allocation2 + $0xd0] sm:$0xff]
    %v56 = vld [vmem:[#allocation2 + $0xd8] sm:$0xff]
    %v57 = vld [vmem:[#allocation2 + $0xe0] sm:$0xff]
    %v58 = vld [vmem:[#allocation2 + $0xe8] sm:$0xff]
    %v59 = vld [vmem:[#allocation2 + $0xf0] sm:$0xff]
    %v60 = vld [vmem:[#allocation2 + $0xf8] sm:$0xff]
    %v61 = vld [vmem:[%s2] sm:$0x3]
    %v63 = vlaneseq
    %v64 = vshrl.u32 %v63, 7
    %v65 = vsub.s32 0, %v64
    %v66 = vrot.slane %v61, %v65
    %v67 = vlaneseq
    %v68 = vshrl.u32 %v67, 7
    %v69 = vsub.s32 1, %v68
    %v70 = vrot.slane %v61, %v69
    %v75 = vunpack.c.l.s4 1966171168
    %v76 = vunpack.c.0.s8 %v75
    %v77 = vlaneseq
    %v78 = vshrl.u32 %v77, 7
    %v79 = vsub.s32 %v76, %v78
    %v80 = vrot.slane %v28, %v79
    %v81 = vcombine.high %v80, %v80
    %v83 = vunpack.c.l.s4 1966171168
    %v84 = vunpack.c.0.s8 %v83
    %v85 = vlaneseq
    %v86 = vshrl.u32 %v85, 7
    %v87 = vsub.s32 %v84, %v86
    %v88 = vrot.slane %v80, %v87
    %v90 = vunpack.c.l.s4 1966171168
    %v91 = vunpack.c.0.s8 %v90
    %v92 = vlaneseq
    %v93 = vshrl.u32 %v92, 7
    %v94 = vsub.s32 %v91, %v93
    %v95 = vrot.slane %v81, %v94
    %v130 = vunpack.c.l.b16 %v29
    %v131 = vunpack.c.h.b16 %v29
    %v132 = vunpack.c.l.b16 %v30
    %v133 = vunpack.c.h.b16 %v30
    %v134 = vunpack.c.l.b16 %v31
    %v135 = vunpack.c.h.b16 %v31
    %v136 = vunpack.c.l.b16 %v32
    %v137 = vunpack.c.h.b16 %v32
    %v138 = vunpack.c.l.b16 %v33
    %v139 = vunpack.c.h.b16 %v33
    %v140 = vunpack.c.l.b16 %v34
    %v141 = vunpack.c.h.b16 %v34
    %v142 = vunpack.c.l.b16 %v35
    %v143 = vunpack.c.h.b16 %v35
    %v144 = vunpack.c.l.b16 %v36
    %v145 = vunpack.c.h.b16 %v36
    %v146 = vunpack.c.l.b16 %v37
    %v147 = vunpack.c.h.b16 %v37
    %v148 = vunpack.c.l.b16 %v38
    %v149 = vunpack.c.h.b16 %v38
    %v150 = vunpack.c.l.b16 %v39
    %v151 = vunpack.c.h.b16 %v39
    %v152 = vunpack.c.l.b16 %v40
    %v153 = vunpack.c.h.b16 %v40
    %v154 = vunpack.c.l.b16 %v41
    %v155 = vunpack.c.h.b16 %v41
    %v156 = vunpack.c.l.b16 %v42
    %v157 = vunpack.c.h.b16 %v42
    %v158 = vunpack.c.l.b16 %v43
    %v159 = vunpack.c.h.b16 %v43
    %v160 = vunpack.c.l.b16 %v44
    %v161 = vunpack.c.h.b16 %v44
    %v162 = vunpack.c.l.b16 %v45
    %v163 = vunpack.c.h.b16 %v45
    %v164 = vunpack.c.l.b16 %v46
    %v165 = vunpack.c.h.b16 %v46
    %v166 = vunpack.c.l.b16 %v47
    %v167 = vunpack.c.h.b16 %v47
    %v168 = vunpack.c.l.b16 %v48
    %v169 = vunpack.c.h.b16 %v48
    %v170 = vunpack.c.l.b16 %v49
    %v171 = vunpack.c.h.b16 %v49
    %v172 = vunpack.c.l.b16 %v50
    %v173 = vunpack.c.h.b16 %v50
    %v174 = vunpack.c.l.b16 %v51
    %v175 = vunpack.c.h.b16 %v51
    %v176 = vunpack.c.l.b16 %v52
    %v177 = vunpack.c.h.b16 %v52
    %v178 = vunpack.c.l.b16 %v53
    %v179 = vunpack.c.h.b16 %v53
    %v180 = vunpack.c.l.b16 %v54
    %v181 = vunpack.c.h.b16 %v54
    %v182 = vunpack.c.l.b16 %v55
    %v183 = vunpack.c.h.b16 %v55
    %v184 = vunpack.c.l.b16 %v56
    %v185 = vunpack.c.h.b16 %v56
    %v186 = vunpack.c.l.b16 %v57
    %v187 = vunpack.c.h.b16 %v57
    %v188 = vunpack.c.l.b16 %v58
    %v189 = vunpack.c.h.b16 %v58
    %v190 = vunpack.c.l.b16 %v59
    %v191 = vunpack.c.h.b16 %v59
    %v192 = vunpack.c.l.b16 %v60
    %v193 = vunpack.c.h.b16 %v60
    %v194 = vpack.c.b16 %v132, %v130
    %v195 = vpack.c.b16 %v133, %v131
    %v196 = vpack.c.b16 %v136, %v134
    %v197 = vpack.c.b16 %v137, %v135
    %v198 = vpack.c.b16 %v140, %v138
    %v199 = vpack.c.b16 %v141, %v139
    %v200 = vpack.c.b16 %v144, %v142
    %v201 = vpack.c.b16 %v145, %v143
    %v202 = vpack.c.b16 %v148, %v146
    %v203 = vpack.c.b16 %v149, %v147
    %v204 = vpack.c.b16 %v152, %v150
    %v205 = vpack.c.b16 %v153, %v151
    %v206 = vpack.c.b16 %v156, %v154
    %v207 = vpack.c.b16 %v157, %v155
    %v208 = vpack.c.b16 %v160, %v158
    %v209 = vpack.c.b16 %v161, %v159
    %v210 = vpack.c.b16 %v164, %v162
    %v211 = vpack.c.b16 %v165, %v163
    %v212 = vpack.c.b16 %v168, %v166
    %v213 = vpack.c.b16 %v169, %v167
    %v214 = vpack.c.b16 %v172, %v170
    %v215 = vpack.c.b16 %v173, %v171
    %v216 = vpack.c.b16 %v176, %v174
    %v217 = vpack.c.b16 %v177, %v175
    %v218 = vpack.c.b16 %v180, %v178
    %v219 = vpack.c.b16 %v181, %v179
    %v220 = vpack.c.b16 %v184, %v182
    %v221 = vpack.c.b16 %v185, %v183
    %v222 = vpack.c.b16 %v188, %v186
    %v223 = vpack.c.b16 %v189, %v187
    %v224 = vpack.c.b16 %v192, %v190
    %v225 = vpack.c.b16 %v193, %v191
    %258 = vmatprep.subr.bf16.mxu0 %v195
    %259 = vmatpush1.bf16.msra.mxu0 %v194
    %260 = vmatprep.subr.bf16.mxu0 %v197
    %261 = vmatpush1.bf16.msra.mxu0 %v196
    %262 = vmatprep.subr.bf16.mxu0 %v199
    %263 = vmatpush1.bf16.msra.mxu0 %v198
    %264 = vmatprep.subr.bf16.mxu0 %v201
    %265 = vmatpush1.bf16.msra.mxu0 %v200
    %266 = vmatprep.subr.bf16.mxu0 %v203
    %267 = vmatpush1.bf16.msra.mxu0 %v202
    %268 = vmatprep.subr.bf16.mxu0 %v205
    %269 = vmatpush1.bf16.msra.mxu0 %v204
    %270 = vmatprep.subr.bf16.mxu0 %v207
    %271 = vmatpush1.bf16.msra.mxu0 %v206
    %272 = vmatprep.subr.bf16.mxu0 %v209
    %273 = vmatpush1.bf16.msra.mxu0 %v208
    %274 = vmatprep.subr.bf16.mxu0 %v211
    %275 = vmatpush1.bf16.msra.mxu0 %v210
    %276 = vmatprep.subr.bf16.mxu0 %v213
    %277 = vmatpush1.bf16.msra.mxu0 %v212
    %278 = vmatprep.subr.bf16.mxu0 %v215
    %279 = vmatpush1.bf16.msra.mxu0 %v214
    %280 = vmatprep.subr.bf16.mxu0 %v217
    %281 = vmatpush1.bf16.msra.mxu0 %v216
    %282 = vmatprep.subr.bf16.mxu0 %v219
    %283 = vmatpush1.bf16.msra.mxu0 %v218
    %284 = vmatprep.subr.bf16.mxu0 %v221
    %285 = vmatpush1.bf16.msra.mxu0 %v220
    %286 = vmatprep.subr.bf16.mxu0 %v223
    %287 = vmatpush1.bf16.msra.mxu0 %v222
    %288 = vmatprep.subr.bf16.mxu0 %v225
    %289 = vmatpush1.bf16.msra.mxu0 %v224
    %290 = vmatprep.mubr.bf16.mxu0 %v95
    %291 = vmatmul.mubr.bf16.gmra.mrb[0].mxu0 %v88
    %v292 = vpop.f32.mrb[0].mxu0
    %v293 = vadd.f32 %v66, %v292
    %v294 = vpop.f32.mrb[0].mxu0
    %v295 = vadd.f32 %v70, %v294
    %v296 = vpop.f32.mrb[0].mxu0
    %v297 = vpop.f32.mrb[0].mxu0
    %298 = vdwg.mxu0
    %v299 = vmul.f32 %v293, 0.5
    %v300 = vmul.f32 %v295, 0.5
    %v301 = vmul.f32 %v293, 0.044715
    %v302 = vmul.f32 %v295, 0.044715
    %v303 = vmul.f32 %v301, %v293
    %v304 = vmul.f32 %v302, %v295
    %v305 = vmul.f32 %v303, %v293
    %v306 = vmul.f32 %v304, %v295
    %v307 = vadd.f32 %v293, %v305
    %v308 = vadd.f32 %v295, %v306
    %v309 = vmul.f32 %v307, 0.7978846
    %v310 = vmul.f32 %v308, 0.7978846
    %v311 = vtanh.pop %v309
    %v312 = vtanh.pop %v310
    %v313 = vadd.f32 %v311, 1.0
    %v314 = vadd.f32 %v312, 1.0
    %v315 = vmul.f32 %v299, %v313
    %v316 = vmul.f32 %v300, %v314
    %v317 = vpack.c.bf16 %v315, %v315
    %v318 = vpack.c.bf16 %v316, %v316
    %s319 = scalar_lea.vmem [#allocation2], 256
    %v320 = vld [vmem:[%s319] sm:$0xff]
    %v321 = vld [vmem:[%s319 + $0x8] sm:$0xff]
    %v322 = vld [vmem:[%s319 + $0x10] sm:$0xff]
    %v323 = vld [vmem:[%s319 + $0x18] sm:$0xff]
    %v324 = vld [vmem:[%s319 + $0x20] sm:$0xff]
    %v325 = vld [vmem:[%s319 + $0x28] sm:$0xff]
    %v326 = vld [vmem:[%s319 + $0x30] sm:$0xff]
    %v327 = vld [vmem:[%s319 + $0x38] sm:$0xff]
    %v328 = vld [vmem:[%s319 + $0x40] sm:$0xff]
    %v329 = vld [vmem:[%s319 + $0x48] sm:$0xff]
    %v330 = vld [vmem:[%s319 + $0x50] sm:$0xff]
    %v331 = vld [vmem:[%s319 + $0x58] sm:$0xff]
    %v332 = vld [vmem:[%s319 + $0x60] sm:$0xff]
    %v333 = vld [vmem:[%s319 + $0x68] sm:$0xff]
    %v334 = vld [vmem:[%s319 + $0x70] sm:$0xff]
    %v335 = vld [vmem:[%s319 + $0x78] sm:$0xff]
    %v336 = vld [vmem:[%s319 + $0x80] sm:$0xff]
    %v337 = vld [vmem:[%s319 + $0x88] sm:$0xff]
    %v338 = vld [vmem:[%s319 + $0x90] sm:$0xff]
    %v339 = vld [vmem:[%s319 + $0x98] sm:$0xff]
    %v340 = vld [vmem:[%s319 + $0xa0] sm:$0xff]
    %v341 = vld [vmem:[%s319 + $0xa8] sm:$0xff]
    %v342 = vld [vmem:[%s319 + $0xb0] sm:$0xff]
    %v343 = vld [vmem:[%s319 + $0xb8] sm:$0xff]
    %v344 = vld [vmem:[%s319 + $0xc0] sm:$0xff]
    %v345 = vld [vmem:[%s319 + $0xc8] sm:$0xff]
    %v346 = vld [vmem:[%s319 + $0xd0] sm:$0xff]
    %v347 = vld [vmem:[%s319 + $0xd8] sm:$0xff]
    %v348 = vld [vmem:[%s319 + $0xe0] sm:$0xff]
    %v349 = vld [vmem:[%s319 + $0xe8] sm:$0xff]
    %v350 = vld [vmem:[%s319 + $0xf0] sm:$0xff]
    %v351 = vld [vmem:[%s319 + $0xf8] sm:$0xff]
    %s352 = scalar_lea.vmem %s2, 2
    %v353 = vld [vmem:[%s352] sm:$0x3]
    %v355 = vlaneseq
    %v356 = vshrl.u32 %v355, 7
    %v357 = vsub.s32 0, %v356
    %v358 = vrot.slane %v353, %v357
    %v359 = vlaneseq
    %v360 = vshrl.u32 %v359, 7
    %v361 = vsub.s32 1, %v360
    %v362 = vrot.slane %v353, %v361
    %v397 = vunpack.c.l.b16 %v320
    %v398 = vunpack.c.h.b16 %v320
    %v399 = vunpack.c.l.b16 %v321
    %v400 = vunpack.c.h.b16 %v321
    %v401 = vunpack.c.l.b16 %v322
    %v402 = vunpack.c.h.b16 %v322
    %v403 = vunpack.c.l.b16 %v323
    %v404 = vunpack.c.h.b16 %v323
    %v405 = vunpack.c.l.b16 %v324
    %v406 = vunpack.c.h.b16 %v324
    %v407 = vunpack.c.l.b16 %v325
    %v408 = vunpack.c.h.b16 %v325
    %v409 = vunpack.c.l.b16 %v326
    %v410 = vunpack.c.h.b16 %v326
    %v411 = vunpack.c.l.b16 %v327
    %v412 = vunpack.c.h.b16 %v327
    %v413 = vunpack.c.l.b16 %v328
    %v414 = vunpack.c.h.b16 %v328
    %v415 = vunpack.c.l.b16 %v329
    %v416 = vunpack.c.h.b16 %v329
    %v417 = vunpack.c.l.b16 %v330
    %v418 = vunpack.c.h.b16 %v330
    %v419 = vunpack.c.l.b16 %v331
    %v420 = vunpack.c.h.b16 %v331
    %v421 = vunpack.c.l.b16 %v332
    %v422 = vunpack.c.h.b16 %v332
    %v423 = vunpack.c.l.b16 %v333
    %v424 = vunpack.c.h.b16 %v333
    %v425 = vunpack.c.l.b16 %v334
    %v426 = vunpack.c.h.b16 %v334
    %v427 = vunpack.c.l.b16 %v335
    %v428 = vunpack.c.h.b16 %v335
    %v429 = vunpack.c.l.b16 %v336
    %v430 = vunpack.c.h.b16 %v336
    %v431 = vunpack.c.l.b16 %v337
    %v432 = vunpack.c.h.b16 %v337
    %v433 = vunpack.c.l.b16 %v338
    %v434 = vunpack.c.h.b16 %v338
    %v435 = vunpack.c.l.b16 %v339
    %v436 = vunpack.c.h.b16 %v339
    %v437 = vunpack.c.l.b16 %v340
    %v438 = vunpack.c.h.b16 %v340
    %v439 = vunpack.c.l.b16 %v341
    %v440 = vunpack.c.h.b16 %v341
    %v441 = vunpack.c.l.b16 %v342
    %v442 = vunpack.c.h.b16 %v342
    %v443 = vunpack.c.l.b16 %v343
    %v444 = vunpack.c.h.b16 %v343
    %v445 = vunpack.c.l.b16 %v344
    %v446 = vunpack.c.h.b16 %v344
    %v447 = vunpack.c.l.b16 %v345
    %v448 = vunpack.c.h.b16 %v345
    %v449 = vunpack.c.l.b16 %v346
    %v450 = vunpack.c.h.b16 %v346
    %v451 = vunpack.c.l.b16 %v347
    %v452 = vunpack.c.h.b16 %v347
    %v453 = vunpack.c.l.b16 %v348
    %v454 = vunpack.c.h.b16 %v348
    %v455 = vunpack.c.l.b16 %v349
    %v456 = vunpack.c.h.b16 %v349
    %v457 = vunpack.c.l.b16 %v350
    %v458 = vunpack.c.h.b16 %v350
    %v459 = vunpack.c.l.b16 %v351
    %v460 = vunpack.c.h.b16 %v351
    %v461 = vpack.c.b16 %v399, %v397
    %v462 = vpack.c.b16 %v400, %v398
    %v463 = vpack.c.b16 %v403, %v401
    %v464 = vpack.c.b16 %v404, %v402
    %v465 = vpack.c.b16 %v407, %v405
    %v466 = vpack.c.b16 %v408, %v406
    %v467 = vpack.c.b16 %v411, %v409
    %v468 = vpack.c.b16 %v412, %v410
    %v469 = vpack.c.b16 %v415, %v413
    %v470 = vpack.c.b16 %v416, %v414
    %v471 = vpack.c.b16 %v419, %v417
    %v472 = vpack.c.b16 %v420, %v418
    %v473 = vpack.c.b16 %v423, %v421
    %v474 = vpack.c.b16 %v424, %v422
    %v475 = vpack.c.b16 %v427, %v425
    %v476 = vpack.c.b16 %v428, %v426
    %v477 = vpack.c.b16 %v431, %v429
    %v478 = vpack.c.b16 %v432, %v430
    %v479 = vpack.c.b16 %v435, %v433
    %v480 = vpack.c.b16 %v436, %v434
    %v481 = vpack.c.b16 %v439, %v437
    %v482 = vpack.c.b16 %v440, %v438
    %v483 = vpack.c.b16 %v443, %v441
    %v484 = vpack.c.b16 %v444, %v442
    %v485 = vpack.c.b16 %v447, %v445
    %v486 = vpack.c.b16 %v448, %v446
    %v487 = vpack.c.b16 %v451, %v449
    %v488 = vpack.c.b16 %v452, %v450
    %v489 = vpack.c.b16 %v455, %v453
    %v490 = vpack.c.b16 %v456, %v454
    %v491 = vpack.c.b16 %v459, %v457
    %v492 = vpack.c.b16 %v460, %v458
    %525 = vmatprep.subr.bf16.mxu0 %v462
    %526 = vmatpush1.bf16.msra.mxu0 %v461
    %527 = vmatprep.subr.bf16.mxu0 %v464
    %528 = vmatpush1.bf16.msra.mxu0 %v463
    %529 = vmatprep.subr.bf16.mxu0 %v466
    %530 = vmatpush1.bf16.msra.mxu0 %v465
    %531 = vmatprep.subr.bf16.mxu0 %v468
    %532 = vmatpush1.bf16.msra.mxu0 %v467
    %533 = vmatprep.subr.bf16.mxu0 %v470
    %534 = vmatpush1.bf16.msra.mxu0 %v469
    %535 = vmatprep.subr.bf16.mxu0 %v472
    %536 = vmatpush1.bf16.msra.mxu0 %v471
    %537 = vmatprep.subr.bf16.mxu0 %v474
    %538 = vmatpush1.bf16.msra.mxu0 %v473
    %539 = vmatprep.subr.bf16.mxu0 %v476
    %540 = vmatpush1.bf16.msra.mxu0 %v475
    %541 = vmatprep.subr.bf16.mxu0 %v478
    %542 = vmatpush1.bf16.msra.mxu0 %v477
    %543 = vmatprep.subr.bf16.mxu0 %v480
    %544 = vmatpush1.bf16.msra.mxu0 %v479
    %545 = vmatprep.subr.bf16.mxu0 %v482
    %546 = vmatpush1.bf16.msra.mxu0 %v481
    %547 = vmatprep.subr.bf16.mxu0 %v484
    %548 = vmatpush1.bf16.msra.mxu0 %v483
    %549 = vmatprep.subr.bf16.mxu0 %v486
    %550 = vmatpush1.bf16.msra.mxu0 %v485
    %551 = vmatprep.subr.bf16.mxu0 %v488
    %552 = vmatpush1.bf16.msra.mxu0 %v487
    %553 = vmatprep.subr.bf16.mxu0 %v490
    %554 = vmatpush1.bf16.msra.mxu0 %v489
    %555 = vmatprep.subr.bf16.mxu0 %v492
    %556 = vmatpush1.bf16.msra.mxu0 %v491
    %557 = vmatprep.mubr.bf16.mxu0 %v318
    %558 = vmatmul.mubr.bf16.gmra.mrb[0].mxu0 %v317
    %v559 = vpop.f32.mrb[0].mxu0
    %v560 = vadd.f32 %v358, %v559
    %v561 = vpop.f32.mrb[0].mxu0
    %v562 = vadd.f32 %v362, %v561
    %v563 = vpop.f32.mrb[0].mxu0
    %v564 = vpop.f32.mrb[0].mxu0
    %565 = vdwg.mxu0
    %v566 = vmul.f32 %v560, 0.5
    %v567 = vmul.f32 %v562, 0.5
    %v568 = vmul.f32 %v560, 0.044715
    %v569 = vmul.f32 %v562, 0.044715
    %v570 = vmul.f32 %v568, %v560
    %v571 = vmul.f32 %v569, %v562
    %v572 = vmul.f32 %v570, %v560
    %v573 = vmul.f32 %v571, %v562
    %v574 = vadd.f32 %v560, %v572
    %v575 = vadd.f32 %v562, %v573
    %v576 = vmul.f32 %v574, 0.7978846
    %v577 = vmul.f32 %v575, 0.7978846
    %v578 = vtanh.pop %v576
    %v579 = vtanh.pop %v577
    %v580 = vadd.f32 %v578, 1.0
    %v581 = vadd.f32 %v579, 1.0
    %v582 = vmul.f32 %v566, %v580
    %v583 = vmul.f32 %v567, %v581
    %v584 = vpack.c.bf16 %v582, %v582
    %v585 = vpack.c.bf16 %v583, %v583
    %s586 = scalar_lea.vmem [#allocation2], 512
    %v587 = vld [vmem:[%s586] sm:$0xff]
    %v588 = vld [vmem:[%s586 + $0x8] sm:$0xff]
    %v589 = vld [vmem:[%s586 + $0x10] sm:$0xff]
    %v590 = vld [vmem:[%s586 + $0x18] sm:$0xff]
    %v591 = vld [vmem:[%s586 + $0x20] sm:$0xff]
    %v592 = vld [vmem:[%s586 + $0x28] sm:$0xff]
    %v593 = vld [vmem:[%s586 + $0x30] sm:$0xff]
    %v594 = vld [vmem:[%s586 + $0x38] sm:$0xff]
    %v595 = vld [vmem:[%s586 + $0x40] sm:$0xff]
    %v596 = vld [vmem:[%s586 + $0x48] sm:$0xff]
    %v597 = vld [vmem:[%s586 + $0x50] sm:$0xff]
    %v598 = vld [vmem:[%s586 + $0x58] sm:$0xff]
    %v599 = vld [vmem:[%s586 + $0x60] sm:$0xff]
    %v600 = vld [vmem:[%s586 + $0x68] sm:$0xff]
    %v601 = vld [vmem:[%s586 + $0x70] sm:$0xff]
    %v602 = vld [vmem:[%s586 + $0x78] sm:$0xff]
    %v603 = vld [vmem:[%s586 + $0x80] sm:$0xff]
    %v604 = vld [vmem:[%s586 + $0x88] sm:$0xff]
    %v605 = vld [vmem:[%s586 + $0x90] sm:$0xff]
    %v606 = vld [vmem:[%s586 + $0x98] sm:$0xff]
    %v607 = vld [vmem:[%s586 + $0xa0] sm:$0xff]
    %v608 = vld [vmem:[%s586 + $0xa8] sm:$0xff]
    %v609 = vld [vmem:[%s586 + $0xb0] sm:$0xff]
    %v610 = vld [vmem:[%s586 + $0xb8] sm:$0xff]
    %v611 = vld [vmem:[%s586 + $0xc0] sm:$0xff]
    %v612 = vld [vmem:[%s586 + $0xc8] sm:$0xff]
    %v613 = vld [vmem:[%s586 + $0xd0] sm:$0xff]
    %v614 = vld [vmem:[%s586 + $0xd8] sm:$0xff]
    %v615 = vld [vmem:[%s586 + $0xe0] sm:$0xff]
    %v616 = vld [vmem:[%s586 + $0xe8] sm:$0xff]
    %v617 = vld [vmem:[%s586 + $0xf0] sm:$0xff]
    %v618 = vld [vmem:[%s586 + $0xf8] sm:$0xff]
    %s619 = scalar_lea.vmem %s2, 4
    %v620 = vld [vmem:[%s619] sm:$0x3]
    %v622 = vlaneseq
    %v623 = vshrl.u32 %v622, 7
    %v624 = vsub.s32 0, %v623
    %v625 = vrot.slane %v620, %v624
    %v626 = vlaneseq
    %v627 = vshrl.u32 %v626, 7
    %v628 = vsub.s32 1, %v627
    %v629 = vrot.slane %v620, %v628
    %v664 = vunpack.c.l.b16 %v587
    %v665 = vunpack.c.h.b16 %v587
    %v666 = vunpack.c.l.b16 %v588
    %v667 = vunpack.c.h.b16 %v588
    %v668 = vunpack.c.l.b16 %v589
    %v669 = vunpack.c.h.b16 %v589
    %v670 = vunpack.c.l.b16 %v590
    %v671 = vunpack.c.h.b16 %v590
    %v672 = vunpack.c.l.b16 %v591
    %v673 = vunpack.c.h.b16 %v591
    %v674 = vunpack.c.l.b16 %v592
    %v675 = vunpack.c.h.b16 %v592
    %v676 = vunpack.c.l.b16 %v593
    %v677 = vunpack.c.h.b16 %v593
    %v678 = vunpack.c.l.b16 %v594
    %v679 = vunpack.c.h.b16 %v594
    %v680 = vunpack.c.l.b16 %v595
    %v681 = vunpack.c.h.b16 %v595
    %v682 = vunpack.c.l.b16 %v596
    %v683 = vunpack.c.h.b16 %v596
    %v684 = vunpack.c.l.b16 %v597
    %v685 = vunpack.c.h.b16 %v597
    %v686 = vunpack.c.l.b16 %v598
    %v687 = vunpack.c.h.b16 %v598
    %v688 = vunpack.c.l.b16 %v599
    %v689 = vunpack.c.h.b16 %v599
    %v690 = vunpack.c.l.b16 %v600
    %v691 = vunpack.c.h.b16 %v600
    %v692 = vunpack.c.l.b16 %v601
    %v693 = vunpack.c.h.b16 %v601
    %v694 = vunpack.c.l.b16 %v602
    %v695 = vunpack.c.h.b16 %v602
    %v696 = vunpack.c.l.b16 %v603
    %v697 = vunpack.c.h.b16 %v603
    %v698 = vunpack.c.l.b16 %v604
    %v699 = vunpack.c.h.b16 %v604
    %v700 = vunpack.c.l.b16 %v605
    %v701 = vunpack.c.h.b16 %v605
    %v702 = vunpack.c.l.b16 %v606
    %v703 = vunpack.c.h.b16 %v606
    %v704 = vunpack.c.l.b16 %v607
    %v705 = vunpack.c.h.b16 %v607
    %v706 = vunpack.c.l.b16 %v608
    %v707 = vunpack.c.h.b16 %v608
    %v708 = vunpack.c.l.b16 %v609
    %v709 = vunpack.c.h.b16 %v609
    %v710 = vunpack.c.l.b16 %v610
    %v711 = vunpack.c.h.b16 %v610
    %v712 = vunpack.c.l.b16 %v611
    %v713 = vunpack.c.h.b16 %v611
    %v714 = vunpack.c.l.b16 %v612
    %v715 = vunpack.c.h.b16 %v612
    %v716 = vunpack.c.l.b16 %v613
    %v717 = vunpack.c.h.b16 %v613
    %v718 = vunpack.c.l.b16 %v614
    %v719 = vunpack.c.h.b16 %v614
    %v720 = vunpack.c.l.b16 %v615
    %v721 = vunpack.c.h.b16 %v615
    %v722 = vunpack.c.l.b16 %v616
    %v723 = vunpack.c.h.b16 %v616
    %v724 = vunpack.c.l.b16 %v617
    %v725 = vunpack.c.h.b16 %v617
    %v726 = vunpack.c.l.b16 %v618
    %v727 = vunpack.c.h.b16 %v618
    %v728 = vpack.c.b16 %v666, %v664
    %v729 = vpack.c.b16 %v667, %v665
    %v730 = vpack.c.b16 %v670, %v668
    %v731 = vpack.c.b16 %v671, %v669
    %v732 = vpack.c.b16 %v674, %v672
    %v733 = vpack.c.b16 %v675, %v673
    %v734 = vpack.c.b16 %v678, %v676
    %v735 = vpack.c.b16 %v679, %v677
    %v736 = vpack.c.b16 %v682, %v680
    %v737 = vpack.c.b16 %v683, %v681
    %v738 = vpack.c.b16 %v686, %v684
    %v739 = vpack.c.b16 %v687, %v685
    %v740 = vpack.c.b16 %v690, %v688
    %v741 = vpack.c.b16 %v691, %v689
    %v742 = vpack.c.b16 %v694, %v692
    %v743 = vpack.c.b16 %v695, %v693
    %v744 = vpack.c.b16 %v698, %v696
    %v745 = vpack.c.b16 %v699, %v697
    %v746 = vpack.c.b16 %v702, %v700
    %v747 = vpack.c.b16 %v703, %v701
    %v748 = vpack.c.b16 %v706, %v704
    %v749 = vpack.c.b16 %v707, %v705
    %v750 = vpack.c.b16 %v710, %v708
    %v751 = vpack.c.b16 %v711, %v709
    %v752 = vpack.c.b16 %v714, %v712
    %v753 = vpack.c.b16 %v715, %v713
    %v754 = vpack.c.b16 %v718, %v716
    %v755 = vpack.c.b16 %v719, %v717
    %v756 = vpack.c.b16 %v722, %v720
    %v757 = vpack.c.b16 %v723, %v721
    %v758 = vpack.c.b16 %v726, %v724
    %v759 = vpack.c.b16 %v727, %v725
    %792 = vmatprep.subr.bf16.mxu0 %v729
    %793 = vmatpush1.bf16.msra.mxu0 %v728
    %794 = vmatprep.subr.bf16.mxu0 %v731
    %795 = vmatpush1.bf16.msra.mxu0 %v730
    %796 = vmatprep.subr.bf16.mxu0 %v733
    %797 = vmatpush1.bf16.msra.mxu0 %v732
    %798 = vmatprep.subr.bf16.mxu0 %v735
    %799 = vmatpush1.bf16.msra.mxu0 %v734
    %800 = vmatprep.subr.bf16.mxu0 %v737
    %801 = vmatpush1.bf16.msra.mxu0 %v736
    %802 = vmatprep.subr.bf16.mxu0 %v739
    %803 = vmatpush1.bf16.msra.mxu0 %v738
    %804 = vmatprep.subr.bf16.mxu0 %v741
    %805 = vmatpush1.bf16.msra.mxu0 %v740
    %806 = vmatprep.subr.bf16.mxu0 %v743
    %807 = vmatpush1.bf16.msra.mxu0 %v742
    %808 = vmatprep.subr.bf16.mxu0 %v745
    %809 = vmatpush1.bf16.msra.mxu0 %v744
    %810 = vmatprep.subr.bf16.mxu0 %v747
    %811 = vmatpush1.bf16.msra.mxu0 %v746
    %812 = vmatprep.subr.bf16.mxu0 %v749
    %813 = vmatpush1.bf16.msra.mxu0 %v748
    %814 = vmatprep.subr.bf16.mxu0 %v751
    %815 = vmatpush1.bf16.msra.mxu0 %v750
    %816 = vmatprep.subr.bf16.mxu0 %v753
    %817 = vmatpush1.bf16.msra.mxu0 %v752
    %818 = vmatprep.subr.bf16.mxu0 %v755
    %819 = vmatpush1.bf16.msra.mxu0 %v754
    %820 = vmatprep.subr.bf16.mxu0 %v757
    %821 = vmatpush1.bf16.msra.mxu0 %v756
    %822 = vmatprep.subr.bf16.mxu0 %v759
    %823 = vmatpush1.bf16.msra.mxu0 %v758
    %824 = vmatprep.mubr.bf16.mxu0 %v585
    %825 = vmatmul.mubr.bf16.gmra.mrb[0].mxu0 %v584
    %v826 = vpop.f32.mrb[0].mxu0
    %v827 = vadd.f32 %v625, %v826
    %v828 = vpop.f32.mrb[0].mxu0
    %v829 = vadd.f32 %v629, %v828
    %v830 = vpop.f32.mrb[0].mxu0
    %v831 = vpop.f32.mrb[0].mxu0
    %832 = vdwg.mxu0
    %v833 = vmul.f32 %v827, 0.5
    %v834 = vmul.f32 %v829, 0.5
    %v835 = vmul.f32 %v827, 0.044715
    %v836 = vmul.f32 %v829, 0.044715
    %v837 = vmul.f32 %v835, %v827
    %v838 = vmul.f32 %v836, %v829
    %v839 = vmul.f32 %v837, %v827
    %v840 = vmul.f32 %v838, %v829
    %v841 = vadd.f32 %v827, %v839
    %v842 = vadd.f32 %v829, %v840
    %v843 = vmul.f32 %v841, 0.7978846
    %v844 = vmul.f32 %v842, 0.7978846
    %v845 = vtanh.pop %v843
    %v846 = vtanh.pop %v844
    %v847 = vadd.f32 %v845, 1.0
    %v848 = vadd.f32 %v846, 1.0
    %v849 = vmul.f32 %v833, %v847
    %v850 = vmul.f32 %v834, %v848
    %v851 = vpack.c.bf16 %v849, %v849
    %v852 = vpack.c.bf16 %v850, %v850
    %s853 = scalar_lea.vmem [#allocation2], 768
    %v854 = vld [vmem:[%s853] sm:$0xff]
    %v855 = vld [vmem:[%s853 + $0x8] sm:$0xff]
    %v856 = vld [vmem:[%s853 + $0x10] sm:$0xff]
    %v857 = vld [vmem:[%s853 + $0x18] sm:$0xff]
    %v858 = vld [vmem:[%s853 + $0x20] sm:$0xff]
    %v859 = vld [vmem:[%s853 + $0x28] sm:$0xff]
    %v860 = vld [vmem:[%s853 + $0x30] sm:$0xff]
    %v861 = vld [vmem:[%s853 + $0x38] sm:$0xff]
    %v862 = vld [vmem:[%s853 + $0x40] sm:$0xff]
    %v863 = vld [vmem:[%s853 + $0x48] sm:$0xff]
    %v864 = vld [vmem:[%s853 + $0x50] sm:$0xff]
    %v865 = vld [vmem:[%s853 + $0x58] sm:$0xff]
    %v866 = vld [vmem:[%s853 + $0x60] sm:$0xff]
    %v867 = vld [vmem:[%s853 + $0x68] sm:$0xff]
    %v868 = vld [vmem:[%s853 + $0x70] sm:$0xff]
    %v869 = vld [vmem:[%s853 + $0x78] sm:$0xff]
    %v870 = vld [vmem:[%s853 + $0x80] sm:$0xff]
    %v871 = vld [vmem:[%s853 + $0x88] sm:$0xff]
    %v872 = vld [vmem:[%s853 + $0x90] sm:$0xff]
    %v873 = vld [vmem:[%s853 + $0x98] sm:$0xff]
    %v874 = vld [vmem:[%s853 + $0xa0] sm:$0xff]
    %v875 = vld [vmem:[%s853 + $0xa8] sm:$0xff]
    %v876 = vld [vmem:[%s853 + $0xb0] sm:$0xff]
    %v877 = vld [vmem:[%s853 + $0xb8] sm:$0xff]
    %v878 = vld [vmem:[%s853 + $0xc0] sm:$0xff]
    %v879 = vld [vmem:[%s853 + $0xc8] sm:$0xff]
    %v880 = vld [vmem:[%s853 + $0xd0] sm:$0xff]
    %v881 = vld [vmem:[%s853 + $0xd8] sm:$0xff]
    %v882 = vld [vmem:[%s853 + $0xe0] sm:$0xff]
    %v883 = vld [vmem:[%s853 + $0xe8] sm:$0xff]
    %v884 = vld [vmem:[%s853 + $0xf0] sm:$0xff]
    %v885 = vld [vmem:[%s853 + $0xf8] sm:$0xff]
    %s886 = scalar_lea.vmem %s2, 6
    %v887 = vld [vmem:[%s886] sm:$0x3]
    %v889 = vlaneseq
    %v890 = vshrl.u32 %v889, 7
    %v891 = vsub.s32 0, %v890
    %v892 = vrot.slane %v887, %v891
    %v893 = vlaneseq
    %v894 = vshrl.u32 %v893, 7
    %v895 = vsub.s32 1, %v894
    %v896 = vrot.slane %v887, %v895
    %v931 = vunpack.c.l.b16 %v854
    %v932 = vunpack.c.h.b16 %v854
    %v933 = vunpack.c.l.b16 %v855
    %v934 = vunpack.c.h.b16 %v855
    %v935 = vunpack.c.l.b16 %v856
    %v936 = vunpack.c.h.b16 %v856
    %v937 = vunpack.c.l.b16 %v857
    %v938 = vunpack.c.h.b16 %v857
    %v939 = vunpack.c.l.b16 %v858
    %v940 = vunpack.c.h.b16 %v858
    %v941 = vunpack.c.l.b16 %v859
    %v942 = vunpack.c.h.b16 %v859
    %v943 = vunpack.c.l.b16 %v860
    %v944 = vunpack.c.h.b16 %v860
    %v945 = vunpack.c.l.b16 %v861
    %v946 = vunpack.c.h.b16 %v861
    %v947 = vunpack.c.l.b16 %v862
    %v948 = vunpack.c.h.b16 %v862
    %v949 = vunpack.c.l.b16 %v863
    %v950 = vunpack.c.h.b16 %v863
    %v951 = vunpack.c.l.b16 %v864
    %v952 = vunpack.c.h.b16 %v864
    %v953 = vunpack.c.l.b16 %v865
    %v954 = vunpack.c.h.b16 %v865
    %v955 = vunpack.c.l.b16 %v866
    %v956 = vunpack.c.h.b16 %v866
    %v957 = vunpack.c.l.b16 %v867
    %v958 = vunpack.c.h.b16 %v867
    %v959 = vunpack.c.l.b16 %v868
    %v960 = vunpack.c.h.b16 %v868
    %v961 = vunpack.c.l.b16 %v869
    %v962 = vunpack.c.h.b16 %v869
    %v963 = vunpack.c.l.b16 %v870
    %v964 = vunpack.c.h.b16 %v870
    %v965 = vunpack.c.l.b16 %v871
    %v966 = vunpack.c.h.b16 %v871
    %v967 = vunpack.c.l.b16 %v872
    %v968 = vunpack.c.h.b16 %v872
    %v969 = vunpack.c.l.b16 %v873
    %v970 = vunpack.c.h.b16 %v873
    %v971 = vunpack.c.l.b16 %v874
    %v972 = vunpack.c.h.b16 %v874
    %v973 = vunpack.c.l.b16 %v875
    %v974 = vunpack.c.h.b16 %v875
    %v975 = vunpack.c.l.b16 %v876
    %v976 = vunpack.c.h.b16 %v876
    %v977 = vunpack.c.l.b16 %v877
    %v978 = vunpack.c.h.b16 %v877
    %v979 = vunpack.c.l.b16 %v878
    %v980 = vunpack.c.h.b16 %v878
    %v981 = vunpack.c.l.b16 %v879
    %v982 = vunpack.c.h.b16 %v879
    %v983 = vunpack.c.l.b16 %v880
    %v984 = vunpack.c.h.b16 %v880
    %v985 = vunpack.c.l.b16 %v881
    %v986 = vunpack.c.h.b16 %v881
    %v987 = vunpack.c.l.b16 %v882
    %v988 = vunpack.c.h.b16 %v882
    %v989 = vunpack.c.l.b16 %v883
    %v990 = vunpack.c.h.b16 %v883
    %v991 = vunpack.c.l.b16 %v884
    %v992 = vunpack.c.h.b16 %v884
    %v993 = vunpack.c.l.b16 %v885
    %v994 = vunpack.c.h.b16 %v885
    %v995 = vpack.c.b16 %v933, %v931
    %v996 = vpack.c.b16 %v934, %v932
    %v997 = vpack.c.b16 %v937, %v935
    %v998 = vpack.c.b16 %v938, %v936
    %v999 = vpack.c.b16 %v941, %v939
    %v1000 = vpack.c.b16 %v942, %v940
    %v1001 = vpack.c.b16 %v945, %v943
    %v1002 = vpack.c.b16 %v946, %v944
    %v1003 = vpack.c.b16 %v949, %v947
    %v1004 = vpack.c.b16 %v950, %v948
    %v1005 = vpack.c.b16 %v953, %v951
    %v1006 = vpack.c.b16 %v954, %v952
    %v1007 = vpack.c.b16 %v957, %v955
    %v1008 = vpack.c.b16 %v958, %v956
    %v1009 = vpack.c.b16 %v961, %v959
    %v1010 = vpack.c.b16 %v962, %v960
    %v1011 = vpack.c.b16 %v965, %v963
    %v1012 = vpack.c.b16 %v966, %v964
    %v1013 = vpack.c.b16 %v969, %v967
    %v1014 = vpack.c.b16 %v970, %v968
    %v1015 = vpack.c.b16 %v973, %v971
    %v1016 = vpack.c.b16 %v974, %v972
    %v1017 = vpack.c.b16 %v977, %v975
    %v1018 = vpack.c.b16 %v978, %v976
    %v1019 = vpack.c.b16 %v981, %v979
    %v1020 = vpack.c.b16 %v982, %v980
    %v1021 = vpack.c.b16 %v985, %v983
    %v1022 = vpack.c.b16 %v986, %v984
    %v1023 = vpack.c.b16 %v989, %v987
    %v1024 = vpack.c.b16 %v990, %v988
    %v1025 = vpack.c.b16 %v993, %v991
    %v1026 = vpack.c.b16 %v994, %v992
    %1059 = vmatprep.subr.bf16.mxu0 %v996
    %1060 = vmatpush1.bf16.msra.mxu0 %v995
    %1061 = vmatprep.subr.bf16.mxu0 %v998
    %1062 = vmatpush1.bf16.msra.mxu0 %v997
    %1063 = vmatprep.subr.bf16.mxu0 %v1000
    %1064 = vmatpush1.bf16.msra.mxu0 %v999
    %1065 = vmatprep.subr.bf16.mxu0 %v1002
    %1066 = vmatpush1.bf16.msra.mxu0 %v1001
    %1067 = vmatprep.subr.bf16.mxu0 %v1004
    %1068 = vmatpush1.bf16.msra.mxu0 %v1003
    %1069 = vmatprep.subr.bf16.mxu0 %v1006
    %1070 = vmatpush1.bf16.msra.mxu0 %v1005
    %1071 = vmatprep.subr.bf16.mxu0 %v1008
    %1072 = vmatpush1.bf16.msra.mxu0 %v1007
    %1073 = vmatprep.subr.bf16.mxu0 %v1010
    %1074 = vmatpush1.bf16.msra.mxu0 %v1009
    %1075 = vmatprep.subr.bf16.mxu0 %v1012
    %1076 = vmatpush1.bf16.msra.mxu0 %v1011
    %1077 = vmatprep.subr.bf16.mxu0 %v1014
    %1078 = vmatpush1.bf16.msra.mxu0 %v1013
    %1079 = vmatprep.subr.bf16.mxu0 %v1016
    %1080 = vmatpush1.bf16.msra.mxu0 %v1015
    %1081 = vmatprep.subr.bf16.mxu0 %v1018
    %1082 = vmatpush1.bf16.msra.mxu0 %v1017
    %1083 = vmatprep.subr.bf16.mxu0 %v1020
    %1084 = vmatpush1.bf16.msra.mxu0 %v1019
    %1085 = vmatprep.subr.bf16.mxu0 %v1022
    %1086 = vmatpush1.bf16.msra.mxu0 %v1021
    %1087 = vmatprep.subr.bf16.mxu0 %v1024
    %1088 = vmatpush1.bf16.msra.mxu0 %v1023
    %1089 = vmatprep.subr.bf16.mxu0 %v1026
    %1090 = vmatpush1.bf16.msra.mxu0 %v1025
    %1091 = vmatprep.mubr.bf16.mxu0 %v852
    %1092 = vmatmul.mubr.bf16.gmra.mrb[0].mxu0 %v851
    %v1093 = vpop.f32.mrb[0].mxu0
    %v1094 = vadd.f32 %v892, %v1093
    %v1095 = vpop.f32.mrb[0].mxu0
    %v1096 = vadd.f32 %v896, %v1095
    %v1097 = vpop.f32.mrb[0].mxu0
    %v1098 = vpop.f32.mrb[0].mxu0
    %1099 = vdwg.mxu0
    %v1100 = vpack.c.bf16 %v1094, %v1094
    %v1101 = vpack.c.bf16 %v1096, %v1096
    %v1104 = vcombine.low %v1100, %v1101
    %v1106 = vunpack.c.l.s4 1966171168
    %v1107 = vunpack.c.0.s8 %v1106
    %v1108 = vlaneseq
    %v1109 = vshrl.u32 %v1108, 7
    %v1110 = vsub.s32 %v1107, %v1109
    %v1111 = vrot.slane %v1104, %v1110
    %v1113 = vunpack.c.l.s4 1966171168
    %v1114 = vunpack.c.0.s8 %v1113
    %v1115 = vlaneseq
    %v1116 = vshrl.u32 %v1115, 7
    %v1117 = vsub.s32 %v1114, %v1116
    %v1118 = vrot.slane %v1111, %v1117
    %1120 = vst [vmem:[%s3] sm:$0x3] %v1118
    // Predicated region
    $region18: #{symbolic_executor_forward.1} parent=1 // pred_check
      _
    $region19: #{symbolic_executor_forward.1} parent=1 // pred_check_branch
      %1122 = sbr.rel (0) target = $region21
    $region20: #{symbolic_executor_forward.1} parent=1 // pred_region
      _
    $region21: #{symbolic_executor_forward.1} parent=1 // pred_fallthru
      _
    // Predicated region
    $region22: #{symbolic_executor_forward.1} parent=1 // pred_check
      _
    $region23: #{symbolic_executor_forward.1} parent=1 // pred_check_branch
      %1124 = sbr.rel (0) target = $region25
    $region24: #{symbolic_executor_forward.1} parent=1 // pred_region
      _
    $region25: #{symbolic_executor_forward.1} parent=1 // pred_fallthru
      _
    %1125 = vsyncpa [#allocation3], 1

</llo_original>
